<compile_context>
chip_gen: v5e
topology: v5e:2x2
jax: 0.10.0
libtpu: 0.0.40
codegen_flags: <defaults>
</compile_context>

<pallas_src>
import functools

import jax
import jax.numpy as jnp
from jax.experimental import pallas as pl
from jax.experimental.pallas import tpu as pltpu


# ---------------------------------------------------------------------------
# Kernel: row-tiled LayerNorm (torch-style unbiased std, (std + eps) denominator)
# ---------------------------------------------------------------------------
def _layernorm_kernel(x_ref, alpha_ref, bias_ref, o_ref, *, eps: float, d: int):
    # x_ref: (R, D) tile of flattened rows; alpha_ref/bias_ref: (1, D)
    x = x_ref[...].astype(jnp.float32)                       # (R, D)
    # Single-pass moments with f32 accumulation (one traversal of the tile).
    s1 = jnp.sum(x, axis=-1, keepdims=True)                  # (R, 1)
    s2 = jnp.sum(x * x, axis=-1, keepdims=True)              # (R, 1)
    mean = s1 * (1.0 / float(d))
    # torch.Tensor.std defaults to unbiased=True -> divide by (D - 1); clamp tiny
    # negative cancellation so sqrt never sees a negative value.
    var = jnp.maximum(s2 - s1 * mean, 0.0) * (1.0 / float(max(d - 1, 1)))
    std = jnp.sqrt(var)
    # One divide per row, pushed to the (otherwise idle) EUP slot; exact so the
    # 1e-5 reference tolerance holds.
    inv = pl.reciprocal(std + eps, approx=False)             # (R, 1)
    alpha = alpha_ref[...].astype(jnp.float32)
    bias = bias_ref[...].astype(jnp.float32)
    # TODO(synk): on v6e/v7x with bf16 activations the epilogue could stay bf16-native
    # (reductions already f32); kept f32 here so the same kernel is exact on v5e.
    o_ref[...] = (alpha * ((x - mean) * inv) + bias).astype(o_ref.dtype)


# ---------------------------------------------------------------------------
# Generation-aware VMEM budgeting
# ---------------------------------------------------------------------------
def _vmem_limit_bytes() -> int:
    """~3/4 of physical per-core VMEM, capped at 96 MiB.
    128 MiB parts (v5e/v6e) -> 96 MiB scoped limit; 64 MiB parts (v7x) -> 48 MiB."""
    cap = 64 * 1024 * 1024  # conservative fallback = v7x per-TC VMEM
    try:
        info = pltpu.get_tpu_info()
        cap = int(getattr(info, "vmem_capacity_bytes", cap)) or cap
    except Exception:
        pass
    return int(min((cap * 3) // 4, 96 * 1024 * 1024))


def _pick_block_rows(d: int, itemsize: int, vmem_limit: int):
    # Per-row footprint: 2x double-buffered input + 2x double-buffered output tiles
    # (io dtype) plus ~2 live f32 intermediates inside the kernel body.
    per_row = 4 * d * itemsize + 2 * d * 4
    budget = max(vmem_limit - 4 * 1024 * 1024, 1 * 1024 * 1024)
    br = max(budget // per_row, 1)
    # Sub-32-bit dtypes pack along sublanes: keep rows on packed-sublane boundaries.
    mult = 8 if itemsize >= 4 else (16 if itemsize == 2 else 32)
    br = max(mult, (br // mult) * mult)
    return int(min(br, 8192)), mult


# ---------------------------------------------------------------------------
# Wrapper: lane-dense row tiling, no pad/slice round trip
# ---------------------------------------------------------------------------
def layer_norm(x, alpha, bias, *, eps: float = 1e-6, block_rows: int | None = None):
    """x: (..., D); alpha, bias: (D,). Returns same shape/dtype as x."""
    orig_shape = x.shape
    D = orig_shape[-1]
    x2 = x.reshape(-1, D)                     # lane-dense 2-D view (N rows, D lanes)
    N = x2.shape[0]
    itemsize = jnp.dtype(x2.dtype).itemsize
    vmem_limit = _vmem_limit_bytes()

    if block_rows is None:
        block_rows, mult = _pick_block_rows(D, itemsize, vmem_limit)
    else:
        mult = 8 if itemsize >= 4 else (16 if itemsize == 2 else 32)

    if N <= block_rows:
        # Block equals the full array extent -> always a legal block shape.
        block_rows = N
        grid = 1
    else:
        grid = int(pl.cdiv(N, block_rows))
        # Nudge the grid to an even length so v7x's 2 TensorCores split it evenly.
        if grid > 1 and grid % 2 == 1:
            g = grid + 1
            target = -(-N // g)                              # cdiv(N, g)
            block_rows = max(mult, (-(-target // mult)) * mult)
            grid = int(pl.cdiv(N, block_rows))
        # Non-divisible tails are handled by Mosaic's masked edge block: OOB reads feed
        # only the discarded padded rows, OOB writes are dropped. No jnp.pad needed.

    cost = pl.CostEstimate(
        flops=8 * N * D,
        transcendentals=2 * N,  # sqrt + reciprocal per row
        bytes_accessed=2 * N * D * itemsize + 2 * D * jnp.dtype(alpha.dtype).itemsize,
    )

    kernel = functools.partial(_layernorm_kernel, eps=float(eps), d=int(D))

    out = pl.pallas_call(
        kernel,
        out_shape=jax.ShapeDtypeStruct((N, D), x.dtype),
        grid_spec=pl.GridSpec(
            grid=(grid,),
            in_specs=[
                pl.BlockSpec((block_rows, D), lambda i: (i, 0)),
                pl.BlockSpec((1, D), lambda i: (0, 0)),
                pl.BlockSpec((1, D), lambda i: (0, 0)),
            ],
            out_specs=pl.BlockSpec((block_rows, D), lambda i: (i, 0)),
        ),
        compiler_params=pltpu.CompilerParams(
            dimension_semantics=("parallel",),      # rows independent -> megacore OK
            vmem_limit_bytes=vmem_limit,            # generation-aware scoped limit
        ),
        cost_estimate=cost,
    )(x2, alpha.reshape(1, D), bias.reshape(1, D))

    return out.reshape(orig_shape)


def decoder_forward(x, encoder_output, src_mask, tgt_mask, alpha, bias,
                    *, layers=(), eps: float = 1e-6):
    """Mirrors Decoder.forward: run the layer stack, then the final LayerNorm (Pallas)."""
    # TODO(synk): the decoder layers are an opaque nn.ModuleList with no architecture in
    # the spec; they are applied here as user-supplied JAX callables (identity if empty).
    # Longer term the LN should fuse as an epilogue into the last layer's output
    # projection to remove its standalone HBM round trip.
    for layer in layers:
        x = layer(x, encoder_output, src_mask, tgt_mask)
    return layer_norm(x, alpha, bias, eps=eps)


# ---------------------------------------------------------------------------
# Main
# ---------------------------------------------------------------------------
if __name__ == "__main__":
    B, S, D = 2, 8, 32
    eps = 1e-6

    key = jax.random.PRNGKey(0)
    kx, ke, ka, kb = jax.random.split(key, 4)
    x = jax.random.normal(kx, (B, S, D), dtype=jnp.float32)
    encoder_output = jax.random.normal(ke, (B, S, D), dtype=jnp.float32)
    src_mask = jnp.ones((B, 1, 1, S), dtype=jnp.float32)
    tgt_mask = jnp.ones((B, 1, S, S), dtype=jnp.float32)
    # Non-trivial scale/bias so the affine path is exercised (module inits are 1s/0s).
    alpha = 1.0 + 0.1 * jax.random.normal(ka, (D,), dtype=jnp.float32)
    bias = 0.1 * jax.random.normal(kb, (D,), dtype=jnp.float32)

    out = decoder_forward(x, encoder_output, src_mask, tgt_mask, alpha, bias, layers=())
    out = jax.block_until_ready(out)

    # Plain-JAX reference matching the PyTorch module (unbiased std, std + eps).
    mean = jnp.mean(x, axis=-1, keepdims=True)
    var = jnp.sum((x - mean) ** 2, axis=-1, keepdims=True) / (D - 1)
    std = jnp.sqrt(var)
    ref = alpha * (x - mean) / (std + eps) + bias

    assert out.shape == (B, S, D)
    assert jnp.allclose(out, ref, atol=1e-5, rtol=1e-5), "mismatch vs reference"

    print("KERNEL_OK")
</pallas_src>

<mosaic_0001>
module attributes {stable_mosaic.version = 11 : i64} {
  func.func @_layernorm_kernel(%arg0: i32, %arg1: memref<16x32xf32, #tpu.memory_space<vmem>>, %arg2: memref<1x32xf32, #tpu.memory_space<vmem>>, %arg3: memref<1x32xf32, #tpu.memory_space<vmem>>, %arg4: memref<16x32xf32, #tpu.memory_space<vmem>>) attributes {dimension_semantics = [#tpu.dimension_semantics<parallel>], iteration_bounds = array<i64: 1>, scalar_prefetch = 0 : i64, scratch_operands = 0 : i64, tpu.core_type = #tpu.core_type<tc>, window_params = [{transform_indices = @transform_0, window_bounds = array<i64: 16, 32>}, {pipeline_mode = #tpu.pipeline_mode<synchronous>, transform_indices = @transform_1, window_bounds = array<i64: 1, 32>}, {pipeline_mode = #tpu.pipeline_mode<synchronous>, transform_indices = @transform_2, window_bounds = array<i64: 1, 32>}, {transform_indices = @transform_3, window_bounds = array<i64: 16, 32>}]} {
    %c0 = arith.constant 0 : index
    %c0_0 = arith.constant 0 : index
    %0 = vector.load %arg1[%c0, %c0_0] : memref<16x32xf32, #tpu.memory_space<vmem>>, vector<16x32xf32>
    %cst = arith.constant dense<0.000000e+00> : vector<16xf32>
    %1 = vector.multi_reduction <add>, %0, %cst [1] : vector<16x32xf32> to vector<16xf32>
    %2 = vector.shape_cast %1 : vector<16xf32> to vector<16x1xf32>
    %3 = arith.mulf %0, %0 : vector<16x32xf32>
    %cst_1 = arith.constant dense<0.000000e+00> : vector<16xf32>
    %4 = vector.multi_reduction <add>, %3, %cst_1 [1] : vector<16x32xf32> to vector<16xf32>
    %5 = vector.shape_cast %4 : vector<16xf32> to vector<16x1xf32>
    %cst_2 = arith.constant 3.125000e-02 : f32
    %6 = vector.broadcast %cst_2 : f32 to vector<16x1xf32>
    %7 = arith.mulf %2, %6 : vector<16x1xf32>
    %8 = arith.mulf %2, %7 : vector<16x1xf32>
    %9 = arith.subf %5, %8 : vector<16x1xf32>
    %cst_3 = arith.constant 0.000000e+00 : f32
    %10 = vector.broadcast %cst_3 : f32 to vector<16x1xf32>
    %11 = arith.maximumf %9, %10 : vector<16x1xf32>
    %cst_4 = arith.constant 0.0322580636 : f32
    %12 = vector.broadcast %cst_4 : f32 to vector<16x1xf32>
    %13 = arith.mulf %11, %12 : vector<16x1xf32>
    %14 = math.sqrt %13 : vector<16x1xf32>
    %cst_5 = arith.constant 9.99999997E-7 : f32
    %15 = vector.broadcast %cst_5 : f32 to vector<16x1xf32>
    %16 = arith.addf %14, %15 : vector<16x1xf32>
    %17 = tpu.reciprocal %16 : vector<16x1xf32> -> vector<16x1xf32>
    %c0_6 = arith.constant 0 : index
    %c0_7 = arith.constant 0 : index
    %18 = vector.load %arg2[%c0_6, %c0_7] : memref<1x32xf32, #tpu.memory_space<vmem>>, vector<1x32xf32>
    %c0_8 = arith.constant 0 : index
    %c0_9 = arith.constant 0 : index
    %19 = vector.load %arg3[%c0_8, %c0_9] : memref<1x32xf32, #tpu.memory_space<vmem>>, vector<1x32xf32>
    %20 = vector.broadcast %7 : vector<16x1xf32> to vector<16x32xf32>
    %21 = arith.subf %0, %20 : vector<16x32xf32>
    %22 = vector.broadcast %17 : vector<16x1xf32> to vector<16x32xf32>
    %23 = arith.mulf %21, %22 : vector<16x32xf32>
    %24 = vector.broadcast %18 : vector<1x32xf32> to vector<16x32xf32>
    %25 = arith.mulf %24, %23 : vector<16x32xf32>
    %26 = vector.broadcast %19 : vector<1x32xf32> to vector<16x32xf32>
    %27 = arith.addf %25, %26 : vector<16x32xf32>
    %c0_10 = arith.constant 0 : index
    %c0_11 = arith.constant 0 : index
    %28 = vector.load %arg4[%c0_10, %c0_11] : memref<16x32xf32, #tpu.memory_space<vmem>>, vector<16x32xf32>
    tpu.vector_store %arg4[%c0_10, %c0_11], %27 {strides = array<i32>} : memref<16x32xf32, #tpu.memory_space<vmem>>, vector<16x32xf32>,
    return
  }
  func.func @transform_0(%arg0: i32) -> (i32, i32) {
    %c0_i32 = arith.constant 0 : i32
    %c0_i32_0 = arith.constant 0 : i32
    return %arg0, %c0_i32 : i32, i32
  }
  func.func @transform_1(%arg0: i32) -> (i32, i32) {
    %c0_i32 = arith.constant 0 : i32
    %c0_i32_0 = arith.constant 0 : i32
    %c0_i32_1 = arith.constant 0 : i32
    return %c0_i32, %c0_i32_0 : i32, i32
  }
  func.func @transform_2(%arg0: i32) -> (i32, i32) {
    %c0_i32 = arith.constant 0 : i32
    %c0_i32_0 = arith.constant 0 : i32
    %c0_i32_1 = arith.constant 0 : i32
    return %c0_i32, %c0_i32_0 : i32, i32
  }
  func.func @transform_3(%arg0: i32) -> (i32, i32) {
    %c0_i32 = arith.constant 0 : i32
    %c0_i32_0 = arith.constant 0 : i32
    return %arg0, %c0_i32 : i32, i32
  }
}

</mosaic_0001>

<llo_original>
// kernel: tpu_custom_call.1
$region0: #{tpu_custom_call.1}
  #allocation0 [shape = 'u32[]', space=smem, size = 0x4, offset = 0x4, fixed_abs, tag = 'smem constant byte address 0x4 - core index']
  #allocation1 [shape = 'u32[72,128]{1,0:T(1,128)}', space=vmem, size = 0x9000, scoped, tag = 'internal scratch']
  %s0 = inlined_call_operand.hbm [shape: f32[16,32], index: 0, kind: input, shape index: {}]
  %s1 = inlined_call_operand.hbm [shape: f32[1,32], index: 1, kind: input, shape index: {}]
  %s2 = inlined_call_operand.vmem [shape: f32[1,32], index: 2, kind: input, shape index: {}]
  %s3 = inlined_call_operand.hbm [shape: f32[16,32], index: 3, kind: output, shape index: {}]
  %s4 = sld [smem:[#allocation0]]
  $region30: #{tpu_custom_call.1} parent=0
    _
  %s6 = ssub.s32 1, %s4
  %s7 = scalar_select 0, %s6, %s4
  $region1: #{tpu_custom_call.1} parent=0
    #allocation2 [shape = 'u8[8192]{0}', space=vmem, size = 0x2000, scoped, tag = 'input window, operand 0, single buffered']
    #allocation3 [shape = 's32[1]{0}', space=sflag, size = 0x4, scoped, tag = 'scoped memory for tpu_custom_call.1']
    #allocation4 [shape = 's32[1]{0}', space=sflag, size = 0x4, scoped, tag = 'scoped memory for tpu_custom_call.1']
    #allocation5 [shape = 'u8[512]{0}', space=vmem, size = 0x400, scoped, tag = 'input window, operand 1, single buffered']
    #allocation6 [shape = 's32[1]{0}', space=sflag, size = 0x4, scoped, tag = 'scoped memory for tpu_custom_call.1']
    #allocation7 [shape = 'u8[8192]{0}', space=vmem, size = 0x2000, scoped, tag = 'output window, operand 0, single buffered']
    %8 = vsyncpa [#allocation3], 0
    %9 = vsyncpa [#allocation6], 0
    %10 = vsyncpa [#allocation4], 0
    // Predicated region
    $region2: #{tpu_custom_call.1} parent=1 // pred_check
      _
    $region3: #{tpu_custom_call.1} parent=1 // pred_check_branch
      %12 = sbr.rel (0) target = $region5
    $region4: #{tpu_custom_call.1} parent=1 // pred_region
      %14 = vsyncadd [#allocation3], 0
      %s15 = sshll.u32 %s0, 4
      %s16 = int_to_ptr.hbm [resolvable:$true] %s15
      %s17 = sshll.u32 [#allocation2], 4
      %s18 = int_to_ptr.vmem [resolvable:$true] %s17
      %23 = dma.hbm_to_vmem [thread:$0]  %s16, 256, %s18, [#allocation3], 128, 128, 8
    $region5: #{tpu_custom_call.1} parent=1 // pred_fallthru
      _
    // Predicated region
    $region6: #{tpu_custom_call.1} parent=1 // pred_check
      _
    $region7: #{tpu_custom_call.1} parent=1 // pred_check_branch
      %25 = sbr.rel (0) target = $region9
    $region8: #{tpu_custom_call.1} parent=1 // pred_region
      %27 = vsyncadd [#allocation6], 0
      %s29 = sshll.u32 %s1, 4
      %s30 = int_to_ptr.hbm [resolvable:$true] %s29
      %s31 = sshll.u32 [#allocation5], 4
      %s32 = int_to_ptr.vmem [resolvable:$true] %s31
      %34 = dma.hbm_to_vmem [thread:$0]  %s30, 16, %s32, [#allocation6]
    $region9: #{tpu_custom_call.1} parent=1 // pred_fallthru
      _
    // Predicated region
    $region10: #{tpu_custom_call.1} parent=1 // pred_check
      _
    $region11: #{tpu_custom_call.1} parent=1 // pred_check_branch
      %36 = sbr.rel (0) target = $region13
    $region12: #{tpu_custom_call.1} parent=1 // pred_region
      _
    $region13: #{tpu_custom_call.1} parent=1 // pred_fallthru
      _
    // Predicated region
    $region14: #{tpu_custom_call.1} parent=1 // pred_check
      _
    $region15: #{tpu_custom_call.1} parent=1 // pred_check_branch
      %38 = sbr.rel (0) target = $region17
    $region16: #{tpu_custom_call.1} parent=1 // pred_region
      %40 = dma.done [#allocation3], 256
    $region17: #{tpu_custom_call.1} parent=1 // pred_fallthru
      _
    // Predicated region
    $region18: #{tpu_custom_call.1} parent=1 // pred_check
      _
    $region19: #{tpu_custom_call.1} parent=1 // pred_check_branch
      %42 = sbr.rel (0) target = $region21
    $region20: #{tpu_custom_call.1} parent=1 // pred_region
      %44 = dma.done [#allocation6], 16
    $region21: #{tpu_custom_call.1} parent=1 // pred_fallthru
      _
    %v45 = vld [vmem:[#allocation2] sm:$0xff]
    %v46 = vld [vmem:[#allocation2 + $0x8] sm:$0xff]
    %vm47 = vcmask 261120
    %v48 = vsel %vm47, %v45, 0.0
    %49 = vadd.xlane.f32.xlu0 %v48
    %v50 = vpop.xlane.xlu0 %49
    %v51 = vsel %vm47, %v46, 0.0
    %52 = vadd.xlane.f32.xlu0 %v51
    %v53 = vpop.xlane.xlu0 %52
    %v54 = vmul.f32 %v45, %v45
    %v55 = vmul.f32 %v46, %v46
    %v56 = vsel %vm47, %v54, 0.0
    %57 = vadd.xlane.f32.xlu0 %v56
    %v58 = vpop.xlane.xlu0 %57
    %v59 = vsel %vm47, %v55, 0.0
    %60 = vadd.xlane.f32.xlu0 %v59
    %v61 = vpop.xlane.xlu0 %60
    %v62 = vmul.f32 %v50, 0.03125
    %v63 = vmul.f32 %v53, 0.03125
    %v64 = vmul.f32 %v50, %v62
    %v65 = vmul.f32 %v53, %v63
    %v66 = vsub.f32 %v58, %v64
    %v67 = vsub.f32 %v61, %v65
    %v68 = vmax.f32 %v66, 0.0
    %v69 = vmax.f32 %v67, 0.0
    %v70 = vmul.f32 %v68, 0.032258064
    %v71 = vmul.f32 %v69, 0.032258064
    %v72 = vrsqrt.pop %v70
    %v73 = vmul.f32 %v72, %v70
    %v74 = vmul.f32 %v73, %v72
    %v75 = vmul.f32 0.5, %v74
    %v76 = vsub.f32 1.5, %v75
    %v77 = vmul.f32 %v72, %v76
    %v78 = vmul.f32 %v70, %v77
    %vm79 = vcmp.eq.f32.partialorder %v70, inf
    %v80 = vsel %vm79, %v70, %v78
    %vm81 = vcmp.eq.f32.partialorder %v70, 0.0
    %v82 = vand.u32 %v70, 2147483648
    %v83 = vsel %vm81, %v82, %v80
    %v84 = vrsqrt.pop %v71
    %v85 = vmul.f32 %v84, %v71
    %v86 = vmul.f32 %v85, %v84
    %v87 = vmul.f32 0.5, %v86
    %v88 = vsub.f32 1.5, %v87
    %v89 = vmul.f32 %v84, %v88
    %v90 = vmul.f32 %v71, %v89
    %vm91 = vcmp.eq.f32.partialorder %v71, inf
    %v92 = vsel %vm91, %v71, %v90
    %vm93 = vcmp.eq.f32.partialorder %v71, 0.0
    %v94 = vand.u32 %v71, 2147483648
    %v95 = vsel %vm93, %v94, %v92
    %v96 = vadd.f32 %v83, 1e-06
    %v97 = vadd.f32 %v95, 1e-06
    %v98 = vrcp.pop %v96
    %v99 = vmul.f32 %v96, %v98
    %v100 = vsub.f32 1.0, %v99
    %v101 = vmul.f32 %v98, %v100
    %v102 = vadd.f32 %v98, %v101
    %vm103 = vweird.f32 %v96
    %vm104 = vweird.f32 %v98
    %vm105 = vmor %vm103, %vm104
    %v106 = vsel %vm105, %v98, %v102
    %v107 = vand.u32 2147483647, %v96
    %vm108 = vcmp.eq.f32.partialorder %v107, 8.507059e+37
    %v109 = vand.u32 %v96, 2147483648
    %v110 = vor.u32 1.1754944e-38, %v109
    %v111 = vsel %vm108, %v110, %v106
    %v112 = vrcp.pop %v97
    %v113 = vmul.f32 %v97, %v112
    %v114 = vsub.f32 1.0, %v113
    %v115 = vmul.f32 %v112, %v114
    %v116 = vadd.f32 %v112, %v115
    %vm117 = vweird.f32 %v97
    %vm118 = vweird.f32 %v112
    %vm119 = vmor %vm117, %vm118
    %v120 = vsel %vm119, %v112, %v116
    %v121 = vand.u32 2147483647, %v97
    %vm122 = vcmp.eq.f32.partialorder %v121, 8.507059e+37
    %v123 = vand.u32 %v97, 2147483648
    %v124 = vor.u32 1.1754944e-38, %v123
    %v125 = vsel %vm122, %v124, %v120
    %v126 = vld [vmem:[#allocation5] sm:$0x1]
    %v127 = vld [vmem:[%s2] sm:$0x1]
    %v128 = vsub.f32 %v45, %v62
    %v129 = vsub.f32 %v46, %v63
    %v130 = vmul.f32 %v128, %v111
    %v131 = vmul.f32 %v129, %v125
    %v133 = vperm.slane %v126, 0
    %v135 = vmul.f32 %v133, %v130
    %v136 = vmul.f32 %v133, %v131
    %v138 = vperm.slane %v127, 0
    %v140 = vadd.f32 %v135, %v138
    %v141 = vadd.f32 %v136, %v138
    %142 = vst.msk [vmem:[#allocation7] sm:$0xff] %vm47, %v140
    %143 = vst.msk [vmem:[#allocation7 + $0x8] sm:$0xff] %vm47, %v141
    // Predicated region
    $region22: #{tpu_custom_call.1} parent=1 // pred_check
      _
    $region23: #{tpu_custom_call.1} parent=1 // pred_check_branch
      %145 = sbr.rel (0) target = $region25
    $region24: #{tpu_custom_call.1} parent=1 // pred_region
      %147 = vsyncadd [#allocation4], 0
      %s148 = sshll.u32 [#allocation7], 4
      %s149 = int_to_ptr.vmem [resolvable:$true] %s148
      %s150 = sshll.u32 %s3, 4
      %s151 = int_to_ptr.hbm [resolvable:$true] %s150
      %156 = dma.vmem_to_hbm [thread:$0]  %s149, 256, %s151, [#allocation4], 128, 128, 8
    $region25: #{tpu_custom_call.1} parent=1 // pred_fallthru
      _
    // Predicated region
    $region26: #{tpu_custom_call.1} parent=1 // pred_check
      _
    $region27: #{tpu_custom_call.1} parent=1 // pred_check_branch
      %158 = sbr.rel (0) target = $region29
    $region28: #{tpu_custom_call.1} parent=1 // pred_region
      %160 = dma.done [#allocation4], 256
    $region29: #{tpu_custom_call.1} parent=1 // pred_fallthru
      _
    %161 = vsyncpa [#allocation3], 1
    %162 = vsyncpa [#allocation6], 1
    %163 = vsyncpa [#allocation4], 1

</llo_original>
